<compile_context>
chip_gen: v7x
topology: tpu7x:2x2x1
jax: 0.10.0
libtpu: 0.0.40
codegen_flags: <defaults>
</compile_context>

<pallas_src>
import functools

import jax
import jax.numpy as jnp
from jax import lax
from jax.experimental import pallas as pl
from jax.experimental.pallas import tpu as pltpu


def _round_up(x, m):
    return (x + m - 1) // m * m


def _tile_budget_bytes():
    """Generation-aware byte budget for one streamed scores tile."""
    vmem = None
    try:
        vmem = getattr(pltpu.get_tpu_info(), "vmem_capacity_bytes", None)
    except Exception:
        vmem = None
    if not vmem:
        vmem = 64 << 20  # conservative (v7x-sized) fallback
    # Tiles are double-buffered; keep 2*tile comfortably inside physical VMEM.
    # v5e/v6e (128 MiB) -> 16 MiB tiles; v7x (64 MiB per TC) -> 8 MiB tiles.
    return int(min(16 << 20, max(4 << 20, vmem // 8)))


def _mil_loss_kernel(scores_ref, labels_ref, prob_ref, loss_pc_ref, acc_ref, *,
                     lamda, n_rows, n_cols, block_n, block_c):
    """Processes one (TN, TC) tile of scores per grid step.

    Grid = (C tiles [parallel], N tiles [arbitrary, last / reduction]).
    acc_ref: VMEM (8, TC) f32 running per-class partial sums of relu(scores).
    """
    c = pl.program_id(0)
    n = pl.program_id(1)

    @pl.when(n == 0)
    def _():
        acc_ref[...] = jnp.zeros_like(acc_ref)

    # relu only; the -lamda scale is applied once in the finalize block.
    r = jnp.maximum(scores_ref[...].astype(jnp.float32), 0.0)

    # In-kernel tail masking for partial boundary blocks. These branches are
    # Python-static: no masking code is emitted for aligned shapes.
    if n_rows % block_n != 0:
        row_ids = lax.broadcasted_iota(jnp.int32, r.shape, 0)
        r = jnp.where(row_ids < (n_rows - n * block_n), r, 0.0)
    if n_cols % block_c != 0:
        col_ids = lax.broadcasted_iota(jnp.int32, r.shape, 1)
        r = jnp.where(col_ids < (n_cols - c * block_c), r, 0.0)

    # Pure-VPU partial reduction TN -> 8 sublanes (vreg-wise adds); the 8 -> 1
    # cross-sublane (XLU) reduce is deferred to the finalize block.
    acc_ref[...] += jnp.sum(r.reshape(block_n // 8, 8, block_c), axis=0)

    @pl.when(n == pl.num_programs(1) - 1)
    def _():
        ssum = jnp.sum(acc_ref[...], axis=0, keepdims=True)    # (1, TC)
        neg = ssum * (-lamda)           # == sum over bag of -(lamda * relu(x))
        # prod(exp(s), dim=0) == exp(sum(s, dim=0))
        prob_ref[...] = (1.0 - jnp.exp(neg)).astype(prob_ref.dtype)
        lab = labels_ref[...].astype(jnp.float32)
        # Lane-dense per-class loss contributions; tiny final reduce in wrapper.
        # Padded lanes were masked to zero above => contribute exactly 0 here.
        loss_pc_ref[...] = (-(1.0 - lab) * neg).astype(loss_pc_ref.dtype)


def mil_loss(scores, labels, lamda, *, tile_budget_bytes=None, tc_max=2048):
    """scores: (N, C) float (f32/bf16 streamed natively), labels: (C,) {0,1}.

    Returns (loss scalar f32, probBag (C,) f32).
    """
    lamda = float(lamda)
    assert lamda > 0.0, "lamda must be a positive constant"
    N, C = scores.shape
    itemsize = jnp.dtype(scores.dtype).itemsize
    sub = max(8, 32 // itemsize)  # sublane multiple: 8 f32 / 16 bf16 / 32 i8

    if tile_budget_bytes is None:
        tile_budget_bytes = _tile_budget_bytes()

    # ---- Class (lane) tiling: lane-dense, multiple of 128. ----
    cp_full = _round_up(C, 128)
    TC = min(tc_max, cp_full)
    # v7x megacore: prefer >= 2 tiles along the "parallel" C axis, but only if
    # each DMA'd row segment stays >= 2 KiB.
    if cp_full // TC < 2:
        tc_half = _round_up(pl.cdiv(cp_full, 2), 128)
        if tc_half * itemsize >= 2048:
            TC = tc_half
    n_c = pl.cdiv(C, TC)
    Cp = n_c * TC

    # ---- Row (sublane) tiling from the per-tile byte budget. ----
    max_tn = _round_up(N, sub)
    tn_fit = (tile_budget_bytes // (TC * itemsize)) // sub * sub
    TN = max(sub, min(max_tn, tn_fit))
    n_n = pl.cdiv(N, TN)

    # Only the tiny labels row is padded (zeros => padded classes contribute 0).
    labels2d = jnp.pad(
        labels.astype(jnp.float32).reshape(1, C), ((0, 0), (0, Cp - C))
    )

    grid = (n_c, n_n)  # reduction (N) axis last
    kernel = functools.partial(
        _mil_loss_kernel, lamda=lamda, n_rows=N, n_cols=C, block_n=TN, block_c=TC
    )

    tile_bytes = TN * TC * itemsize
    vmem_limit = int(max(32 << 20, 2 * tile_bytes + (8 << 20)))

    prob2d, loss_pc = pl.pallas_call(
        kernel,
        out_shape=(
            jax.ShapeDtypeStruct((1, Cp), jnp.float32),  # probBag
            jax.ShapeDtypeStruct((1, Cp), jnp.float32),  # per-class loss contribs
        ),
        grid_spec=pltpu.PrefetchScalarGridSpec(
            num_scalar_prefetch=0,
            grid=grid,
            in_specs=[
                pl.BlockSpec((TN, TC), lambda c, n: (n, c)),   # scores tile
                pl.BlockSpec((1, TC), lambda c, n: (0, c)),    # labels row
            ],
            out_specs=(
                pl.BlockSpec((1, TC), lambda c, n: (0, c)),    # resident across N
                pl.BlockSpec((1, TC), lambda c, n: (0, c)),    # resident across N
            ),
            scratch_shapes=[pltpu.VMEM((8, TC), jnp.float32)],
        ),
        compiler_params=pltpu.CompilerParams(
            dimension_semantics=("parallel", "arbitrary"),
            vmem_limit_bytes=vmem_limit,
        ),
        cost_estimate=pl.CostEstimate(
            flops=2 * N * C,
            transcendentals=C,
            bytes_accessed=N * C * itemsize + 3 * Cp * 4,
        ),
    )(scores, labels2d)

    loss = jnp.sum(loss_pc[0, :C])
    prob_bag = prob2d[0, :C]
    return loss, prob_bag


def _mil_loss_ref(scores, labels, lamda):
    """Pure-JAX reference mirroring the PyTorch forward."""
    s = jnp.maximum(scores.astype(jnp.float32), 0.0)
    s = -(lamda * s)
    prob_not = jnp.prod(jnp.exp(s), axis=0)
    prob_bag = 1.0 - prob_not
    sum_scores = jnp.sum(s, axis=0)
    loss = -jnp.dot(1.0 - labels.astype(jnp.float32), sum_scores)
    return loss, prob_bag


if __name__ == "__main__":
    key = jax.random.PRNGKey(0)
    k1, k2, k3, k4 = jax.random.split(key, 4)

    lamda = 0.5  # positive constant from __init__(lamda)

    # Case 1: aligned single-tile path (f32).
    N, C = 8, 128
    scores = jax.random.normal(k1, (N, C), dtype=jnp.float32)
    labels = jax.random.bernoulli(k2, 0.3, (C,)).astype(jnp.float32)
    loss, prob_bag = mil_loss(scores, labels, lamda)
    jax.block_until_ready((loss, prob_bag))
    loss_r, prob_r = _mil_loss_ref(scores, labels, lamda)
    assert jnp.allclose(loss, loss_r, rtol=1e-5, atol=1e-5)
    assert jnp.allclose(prob_bag, prob_r, rtol=1e-5, atol=1e-5)

    # Case 2: ragged (N, C) exercising in-kernel tail masks, no wrapper pad
    # of the scores array.
    N2, C2 = 40, 200
    scores2 = jax.random.normal(k3, (N2, C2), dtype=jnp.float32)
    labels2 = jax.random.bernoulli(k4, 0.3, (C2,)).astype(jnp.float32)
    loss2, prob2 = mil_loss(scores2, labels2, lamda)
    jax.block_until_ready((loss2, prob2))
    loss2_r, prob2_r = _mil_loss_ref(scores2, labels2, lamda)
    assert jnp.allclose(loss2, loss2_r, rtol=1e-5, atol=1e-5)
    assert jnp.allclose(prob2, prob2_r, rtol=1e-5, atol=1e-5)

    # Case 3: native bf16 streaming (halved HBM traffic) + tiny tile budget to
    # force multi-step N accumulation and bf16 (16-sublane) row rounding.
    scores3 = scores2.astype(jnp.bfloat16)
    loss3, prob3 = mil_loss(scores3, labels2, lamda, tile_budget_bytes=256 * 2 * 16)
    jax.block_until_ready((loss3, prob3))
    loss3_r, prob3_r = _mil_loss_ref(scores3, labels2, lamda)
    assert jnp.allclose(loss3, loss3_r, rtol=1e-4, atol=1e-4)
    assert jnp.allclose(prob3, prob3_r, rtol=1e-4, atol=1e-4)

    print("KERNEL_OK")
</pallas_src>

<mosaic_0001>
module attributes {stable_mosaic.version = 11 : i64} {
  func.func @_mil_loss_kernel(%arg0: i32, %arg1: i32, %arg2: memref<8x128xf32, #tpu.memory_space<vmem>>, %arg3: memref<1x128xf32, #tpu.memory_space<vmem>>, %arg4: memref<1x128xf32, #tpu.memory_space<vmem>>, %arg5: memref<1x128xf32, #tpu.memory_space<vmem>>, %arg6: memref<8x128xf32, #tpu.memory_space<vmem>>) attributes {dimension_semantics = [#tpu.dimension_semantics<parallel>, #tpu.dimension_semantics<arbitrary>], iteration_bounds = array<i64: 1, 1>, scalar_prefetch = 0 : i64, scratch_operands = 1 : i64, tpu.core_type = #tpu.core_type<tc>, window_params = [{transform_indices = @transform_0, window_bounds = array<i64: 8, 128>}, {transform_indices = @transform_1, window_bounds = array<i64: 1, 128>}, {transform_indices = @transform_2, window_bounds = array<i64: 1, 128>}, {transform_indices = @transform_3, window_bounds = array<i64: 1, 128>}]} {
    %c0_i32 = arith.constant 0 : i32
    %0 = arith.cmpi eq, %arg1, %c0_i32 : i32
    %1 = arith.extui %0 : i1 to i32
    %c0_i32_0 = arith.constant 0 : i32
    %2 = arith.cmpi ne, %1, %c0_i32_0 : i32
    scf.if %2 {
      %cst_9 = arith.constant 0.000000e+00 : f32
      %14 = vector.broadcast %cst_9 : f32 to vector<8x128xf32>
      %c0_10 = arith.constant 0 : index
      %c0_11 = arith.constant 0 : index
      %15 = vector.load %arg6[%c0_10, %c0_11] : memref<8x128xf32, #tpu.memory_space<vmem>>, vector<8x128xf32>
      tpu.vector_store %arg6[%c0_10, %c0_11], %14 {strides = array<i32>} : memref<8x128xf32, #tpu.memory_space<vmem>>, vector<8x128xf32>,
    } else {
    }
    %c0 = arith.constant 0 : index
    %c0_1 = arith.constant 0 : index
    %3 = vector.load %arg2[%c0, %c0_1] : memref<8x128xf32, #tpu.memory_space<vmem>>, vector<8x128xf32>
    %cst = arith.constant 0.000000e+00 : f32
    %4 = vector.broadcast %cst : f32 to vector<8x128xf32>
    %5 = arith.maximumf %3, %4 : vector<8x128xf32>
    %c0_2 = arith.constant 0 : index
    %c0_3 = arith.constant 0 : index
    %6 = vector.load %arg6[%c0_2, %c0_3] : memref<8x128xf32, #tpu.memory_space<vmem>>, vector<8x128xf32>
    %7 = vector.shape_cast %5 : vector<8x128xf32> to vector<1x8x128xf32>
    %cst_4 = arith.constant dense<0.000000e+00> : vector<8x128xf32>
    %8 = vector.multi_reduction <add>, %7, %cst_4 [0] : vector<1x8x128xf32> to vector<8x128xf32>
    %9 = arith.addf %6, %8 : vector<8x128xf32>
    %c0_5 = arith.constant 0 : index
    %c0_6 = arith.constant 0 : index
    %10 = vector.load %arg6[%c0_5, %c0_6] : memref<8x128xf32, #tpu.memory_space<vmem>>, vector<8x128xf32>
    tpu.vector_store %arg6[%c0_5, %c0_6], %9 {strides = array<i32>} : memref<8x128xf32, #tpu.memory_space<vmem>>, vector<8x128xf32>,
    %c0_i32_7 = arith.constant 0 : i32
    %11 = arith.cmpi eq, %arg1, %c0_i32_7 : i32
    %12 = arith.extui %11 : i1 to i32
    %c0_i32_8 = arith.constant 0 : i32
    %13 = arith.cmpi ne, %12, %c0_i32_8 : i32
    scf.if %13 {
      %c0_9 = arith.constant 0 : index
      %c0_10 = arith.constant 0 : index
      %14 = vector.load %arg6[%c0_9, %c0_10] : memref<8x128xf32, #tpu.memory_space<vmem>>, vector<8x128xf32>
      %cst_11 = arith.constant dense<0.000000e+00> : vector<128xf32>
      %15 = vector.multi_reduction <add>, %14, %cst_11 [0] : vector<8x128xf32> to vector<128xf32>
      %16 = vector.shape_cast %15 : vector<128xf32> to vector<1x128xf32>
      %cst_12 = arith.constant -5.000000e-01 : f32
      %17 = vector.broadcast %cst_12 : f32 to vector<1x128xf32>
      %18 = arith.mulf %16, %17 : vector<1x128xf32>
      %19 = math.exp %18 : vector<1x128xf32>
      %cst_13 = arith.constant 1.000000e+00 : f32
      %20 = vector.broadcast %cst_13 : f32 to vector<1x128xf32>
      %21 = arith.subf %20, %19 : vector<1x128xf32>
      %c0_14 = arith.constant 0 : index
      %c0_15 = arith.constant 0 : index
      %22 = vector.load %arg4[%c0_14, %c0_15] : memref<1x128xf32, #tpu.memory_space<vmem>>, vector<1x128xf32>
      tpu.vector_store %arg4[%c0_14, %c0_15], %21 {strides = array<i32>} : memref<1x128xf32, #tpu.memory_space<vmem>>, vector<1x128xf32>,
      %c0_16 = arith.constant 0 : index
      %c0_17 = arith.constant 0 : index
      %23 = vector.load %arg3[%c0_16, %c0_17] : memref<1x128xf32, #tpu.memory_space<vmem>>, vector<1x128xf32>
      %cst_18 = arith.constant 1.000000e+00 : f32
      %24 = vector.broadcast %cst_18 : f32 to vector<1x128xf32>
      %25 = arith.subf %24, %23 : vector<1x128xf32>
      %cst_19 = arith.constant 0.000000e+00 : f32
      %26 = vector.broadcast %cst_19 : f32 to vector<1x128xf32>
      %27 = arith.subf %26, %25 : vector<1x128xf32>
      %28 = arith.mulf %27, %18 : vector<1x128xf32>
      %c0_20 = arith.constant 0 : index
      %c0_21 = arith.constant 0 : index
      %29 = vector.load %arg5[%c0_20, %c0_21] : memref<1x128xf32, #tpu.memory_space<vmem>>, vector<1x128xf32>
      tpu.vector_store %arg5[%c0_20, %c0_21], %28 {strides = array<i32>} : memref<1x128xf32, #tpu.memory_space<vmem>>, vector<1x128xf32>,
    } else {
    }
    return
  }
  func.func @transform_0(%arg0: i32, %arg1: i32) -> (i32, i32) {
    %c0_i32 = arith.constant 0 : i32
    return %arg1, %arg0 : i32, i32
  }
  func.func @transform_1(%arg0: i32, %arg1: i32) -> (i32, i32) {
    %c0_i32 = arith.constant 0 : i32
    %c0_i32_0 = arith.constant 0 : i32
    return %c0_i32, %arg0 : i32, i32
  }
  func.func @transform_2(%arg0: i32, %arg1: i32) -> (i32, i32) {
    %c0_i32 = arith.constant 0 : i32
    %c0_i32_0 = arith.constant 0 : i32
    return %c0_i32, %arg0 : i32, i32
  }
  func.func @transform_3(%arg0: i32, %arg1: i32) -> (i32, i32) {
    %c0_i32 = arith.constant 0 : i32
    %c0_i32_0 = arith.constant 0 : i32
    return %c0_i32, %arg0 : i32, i32
  }
}

</mosaic_0001>

<llo_original>
// kernel: tpu_custom_call.1
$region0: #{tpu_custom_call.1}
  #allocation0 [shape = 'u32[]', space=smem, size = 0x4, offset = 0x4, fixed_abs, tag = 'smem constant byte address 0x4 - core index']
  #allocation1 [shape = 'u32[144,128]{1,0:T(1,128)}', space=vmem, size = 0x12000, scoped, tag = 'internal scratch']
  #allocation2 [shape = 'f32[8,128]{1,0:T(8,128)}', space=vmem, size = 0x1000, scoped, tag = 'scratch operand']
  %s0 = inlined_call_operand.hbm [shape: f32[8,128], index: 0, kind: input, shape index: {}]
  %s1 = inlined_call_operand.vmem [shape: f32[1,128], index: 1, kind: input, shape index: {}]
  %s2 = inlined_call_operand.hbm [shape: f32[1,128], index: 2, kind: output, shape index: {0}]
  %s3 = inlined_call_operand.hbm [shape: f32[1,128], index: 3, kind: output, shape index: {1}]
  %4 = xla_tuple %s2, %s3
  %s5 = sld [smem:[#allocation0]]
  $region38: #{tpu_custom_call.1} parent=0
    _
  %s7 = ssub.s32 1, %s5
  %s8 = scalar_select 0, %s7, %s5
  $region1: #{tpu_custom_call.1} parent=0
    #allocation3 [shape = 'u8[4096]{0}', space=vmem, size = 0x1000, scoped, tag = 'input window, operand 0, single buffered']
    #allocation4 [shape = 's32[1]{0}', space=sflag, size = 0x4, scoped, tag = 'scoped memory for tpu_custom_call.1']
    #allocation5 [shape = 's32[1]{0}', space=sflag, size = 0x4, scoped, tag = 'scoped memory for tpu_custom_call.1']
    #allocation6 [shape = 'u8[512]{0}', space=vmem, size = 0x400, scoped, tag = 'output window, operand 0, single buffered']
    #allocation7 [shape = 'u8[512]{0}', space=vmem, size = 0x400, scoped, tag = 'output window, operand 1, single buffered']
    #allocation8 [shape = 's32[1]{0}', space=sflag, size = 0x4, scoped, tag = 'scoped memory for tpu_custom_call.1']
    %9 = vsyncpa [#allocation4], 0
    %10 = vsyncpa [#allocation5], 0
    %11 = vsyncpa [#allocation8], 0
    // Predicated region
    $region2: #{tpu_custom_call.1} parent=1 // pred_check
      _
    $region3: #{tpu_custom_call.1} parent=1 // pred_check_branch
      %13 = sbr.rel (0) target = $region5
    $region4: #{tpu_custom_call.1} parent=1 // pred_region
      %s15 = ssub.s32 128, 128
      %16 = vsyncadd [#allocation4], %s15
      %s18 = sshll.u32 [#allocation3], 4
      %s19 = int_to_ptr.vmem [resolvable:$true] %s18
      %21 = dma.hbm_to_vmem [thread:$0]  %s0, 128, %s19, [#allocation4]
    $region5: #{tpu_custom_call.1} parent=1 // pred_fallthru
      _
    // Predicated region
    $region6: #{tpu_custom_call.1} parent=1 // pred_check
      _
    $region7: #{tpu_custom_call.1} parent=1 // pred_check_branch
      %23 = sbr.rel (0) target = $region9
    $region8: #{tpu_custom_call.1} parent=1 // pred_region
      _
    $region9: #{tpu_custom_call.1} parent=1 // pred_fallthru
      _
    // Predicated region
    $region10: #{tpu_custom_call.1} parent=1 // pred_check
      _
    $region11: #{tpu_custom_call.1} parent=1 // pred_check_branch
      %25 = sbr.rel (0) target = $region13
    $region12: #{tpu_custom_call.1} parent=1 // pred_region
      %26 = dma.done [#allocation4], 128
    $region13: #{tpu_custom_call.1} parent=1 // pred_fallthru
      _
    %p27 = scmp.eq.s32.totalorder 0, 0
    // Predicated region
    $region14: #{tpu_custom_call.1} parent=1 // pred_check
      %p28 = pneg %p27
    $region15: #{tpu_custom_call.1} parent=1 // pred_check_branch
      %30 = sbr.rel (%p28) target = $region17
    $region16: #{tpu_custom_call.1} parent=1 // pred_region
      %31 = vst [vmem:[#allocation2] sm:$0xff] 0.0
    $region17: #{tpu_custom_call.1} parent=1 // pred_fallthru
      _
    %v32 = vld [vmem:[#allocation3] sm:$0xff]
    %v33 = vmax.f32 %v32, 0.0
    %v34 = vld [vmem:[#allocation2] sm:$0xff]
    %v35 = vadd.f32 %v33, 0.0
    %v36 = vadd.f32 %v34, %v35
    %37 = vst [vmem:[#allocation2] sm:$0xff] %v36
    // Predicated region
    $region18: #{tpu_custom_call.1} parent=1 // pred_check
      %p38 = pneg %p27
    $region19: #{tpu_custom_call.1} parent=1 // pred_check_branch
      %40 = sbr.rel (%p38) target = $region21
    $region20: #{tpu_custom_call.1} parent=1 // pred_region
      %v41 = vld [vmem:[#allocation2] sm:$0xff]
      %v42 = vrot.slane %v41, 4
      %v43 = vadd.f32 %v41, %v42
      %v44 = vrot.slane %v43, 2
      %v45 = vadd.f32 %v43, %v44
      %v46 = vrot.slane %v45, 1
      %v47 = vadd.f32 %v45, %v46
      %v48 = vmul.f32 %v47, -0.5
      %v49 = vmul.f32 %v48, 1.442695
      %v50 = vpow.pop %v49
      %v51 = vsub.f32 1.0, %v50
      %52 = vst [vmem:[#allocation6] sm:$0x1] %v51
      %v53 = vld [vmem:[%s1] sm:$0x1]
      %v54 = vsub.f32 1.0, %v53
      %v55 = vsub.f32 0.0, %v54
      %v56 = vmul.f32 %v55, %v48
      %57 = vst [vmem:[#allocation7] sm:$0x1] %v56
    $region21: #{tpu_custom_call.1} parent=1 // pred_fallthru
      _
    // Predicated region
    $region22: #{tpu_custom_call.1} parent=1 // pred_check
      _
    $region23: #{tpu_custom_call.1} parent=1 // pred_check_branch
      %59 = sbr.rel (0) target = $region25
    $region24: #{tpu_custom_call.1} parent=1 // pred_region
      %s61 = ssub.s32 16, 16
      %62 = vsyncadd [#allocation5], %s61
      %s64 = sshll.u32 [#allocation6], 4
      %s65 = int_to_ptr.vmem [resolvable:$true] %s64
      %67 = dma.vmem_to_hbm [thread:$0]  %s65, 16, %s2, [#allocation5]
    $region25: #{tpu_custom_call.1} parent=1 // pred_fallthru
      _
    // Predicated region
    $region26: #{tpu_custom_call.1} parent=1 // pred_check
      _
    $region27: #{tpu_custom_call.1} parent=1 // pred_check_branch
      %69 = sbr.rel (0) target = $region29
    $region28: #{tpu_custom_call.1} parent=1 // pred_region
      %s71 = ssub.s32 16, 16
      %72 = vsyncadd [#allocation8], %s71
      %s74 = sshll.u32 [#allocation7], 4
      %s75 = int_to_ptr.vmem [resolvable:$true] %s74
      %77 = dma.vmem_to_hbm [thread:$0]  %s75, 16, %s3, [#allocation8]
    $region29: #{tpu_custom_call.1} parent=1 // pred_fallthru
      _
    // Predicated region
    $region30: #{tpu_custom_call.1} parent=1 // pred_check
      _
    $region31: #{tpu_custom_call.1} parent=1 // pred_check_branch
      %79 = sbr.rel (0) target = $region33
    $region32: #{tpu_custom_call.1} parent=1 // pred_region
      %80 = dma.done [#allocation5], 16
    $region33: #{tpu_custom_call.1} parent=1 // pred_fallthru
      _
    // Predicated region
    $region34: #{tpu_custom_call.1} parent=1 // pred_check
      _
    $region35: #{tpu_custom_call.1} parent=1 // pred_check_branch
      %82 = sbr.rel (0) target = $region37
    $region36: #{tpu_custom_call.1} parent=1 // pred_region
      %83 = dma.done [#allocation8], 16
    $region37: #{tpu_custom_call.1} parent=1 // pred_fallthru
      _
    %84 = vsyncpa [#allocation4], 1
    %85 = vsyncpa [#allocation5], 1
    %86 = vsyncpa [#allocation8], 1

</llo_original>
